<compile_context>
chip_gen: v6e
topology: v6e:2x2x1
jax: 0.10.0
libtpu: 0.0.40
codegen_flags: <defaults>
</compile_context>

<pallas_src>
import functools

import jax
import jax.numpy as jnp
from jax.experimental import pallas as pl
from jax.experimental.pallas import tpu as pltpu

_LANES_CHOICES = (512, 256, 128)  # widest lane-dense layout that divides size
_MAX_TILE_ROWS = 2048             # 2048 * 512 * 4 B = 4 MiB per f32 tile


def _mc_dropout_kernel(seed_ref, x_ref, o_ref, *, threshold31: int, scale: float):
    """Dropout hot path: stateless counter hash -> keep mask -> f32 rescale."""
    tr, lanes = x_ref.shape                 # static Python ints
    lane_shift = lanes.bit_length() - 1     # lanes is a power of two

    # Fold the tile offset and the seed into ONE scalar constant (scalar-unit
    # work, free).  On multi-tile grids tile_rows is a power of two, so the
    # tile offset is aligned to the tile span and XOR-ing it equals adding it:
    # the per-element counter below is exactly the global flat element index.
    i = pl.program_id(0)
    offset = (i * (tr * lanes)).astype(jnp.uint32)
    smix = seed_ref[0].astype(jnp.uint32) * jnp.uint32(0x9E3779B9)
    scalar_mix = offset ^ smix

    # Per-element local flat index via shift/or (no 32-bit vector multiply).
    row = jax.lax.broadcasted_iota(jnp.int32, (tr, lanes), 0)
    col = jax.lax.broadcasted_iota(jnp.int32, (tr, lanes), 1)
    base = ((row << lane_shift) | col).astype(jnp.uint32)

    # Stateless hash: two multiply rounds (murmur-style, leading/trailing
    # xorshifts dropped).  One multiply would make the keep bit a structured
    # Weyl sequence over sequential counters, so two are kept for i.i.d.-like
    # masks; still ~30% fewer int ops than the previous lowbias32 version.
    h = base ^ scalar_mix
    h = h * jnp.uint32(0x7FEB352D)
    h = h ^ (h >> 15)
    h = h * jnp.uint32(0x846CA68B)

    # Signed-safe 31-bit threshold compare (keep-prob resolution 2^-31).
    keep = (h >> 1).astype(jnp.int32) < jnp.int32(threshold31)

    # Multiply in f32 so 1/(1-p) is not rounded to bf16/f16 (unbiased scale).
    y = x_ref[...].astype(jnp.float32) * jnp.float32(scale)
    o_ref[...] = jnp.where(keep, y, 0.0).astype(o_ref.dtype)


def _mc_dropout_2d(x2d, seed_arr, threshold31: int, scale: float):
    """Run the Pallas kernel over a lane-dense (rows, lanes) slab."""
    rows, lanes = x2d.shape
    if rows < 16:
        tile_rows = rows  # full extent, single grid step (tiny input)
    else:
        # Largest power-of-two tile <= _MAX_TILE_ROWS that still yields >= 2
        # grid steps (lets v7x shard across both TensorCores); power-of-two
        # spans keep the tile-offset/seed fold exact.
        tile_rows = min(_MAX_TILE_ROWS, 1 << ((rows - 1).bit_length() - 1))
    grid = (pl.cdiv(rows, tile_rows),)
    itemsize = x2d.dtype.itemsize

    return pl.pallas_call(
        functools.partial(_mc_dropout_kernel,
                          threshold31=threshold31, scale=scale),
        out_shape=jax.ShapeDtypeStruct(x2d.shape, x2d.dtype),
        grid=grid,
        in_specs=[
            pl.BlockSpec(memory_space=pltpu.SMEM),                 # seed scalar
            pl.BlockSpec((tile_rows, lanes), lambda i: (i, 0)),    # x tile
        ],
        out_specs=pl.BlockSpec((tile_rows, lanes), lambda i: (i, 0)),
        input_output_aliases={1: 0},  # elementwise & shape-preserving
        compiler_params=pltpu.CompilerParams(
            dimension_semantics=("parallel",),      # megacore split on v7x
            vmem_limit_bytes=32 * 1024 * 1024),     # room for 4 MiB tiles, 2x buffered
        cost_estimate=pl.CostEstimate(
            flops=3 * rows * lanes, transcendentals=0,
            bytes_accessed=2 * rows * lanes * itemsize),
    )(seed_arr, x2d)


def _dropout_flat_jnp(vals, start: int, seed_arr, threshold31: int, scale: float):
    """Plain-jnp dropout for tiny ragged tails; same hash as the kernel."""
    idx = jnp.arange(vals.shape[0], dtype=jnp.uint32) + jnp.uint32(start)
    smix = seed_arr[0].astype(jnp.uint32) * jnp.uint32(0x9E3779B9)
    h = idx ^ smix
    h = h * jnp.uint32(0x7FEB352D)
    h = h ^ (h >> 15)
    h = h * jnp.uint32(0x846CA68B)
    keep = (h >> 1).astype(jnp.int32) < jnp.int32(threshold31)
    y = jnp.where(keep, vals.astype(jnp.float32) * jnp.float32(scale), 0.0)
    return y.astype(vals.dtype)


def mc_dropout(x: jax.Array, p: float = 0.5, seed: int = 0) -> jax.Array:
    """Monte Carlo dropout: always applies dropout (training or inference)."""
    if p <= 0.0 or x.size == 0:
        return x  # identity path, same as the PyTorch module
    assert p <= 1.0, "dropout probability must be in [0, 1]"
    if p >= 1.0:
        return jnp.zeros_like(x)  # F.dropout(p=1, training=True) zeros everything

    orig_shape = x.shape
    total = x.size
    assert total < (1 << 31), "counter-based PRNG uses 32-bit element indices"

    keep_prob = 1.0 - p
    scale = 1.0 / keep_prob
    threshold31 = min(int(round(keep_prob * (1 << 31))), (1 << 31) - 1)

    s = seed & 0xFFFFFFFF
    if s >= 1 << 31:
        s -= 1 << 32
    seed_arr = jnp.asarray([s], dtype=jnp.int32)

    flat = x.reshape(-1)

    # Zero-copy path: widest lane width (512/256/128) that divides the size —
    # covers essentially every real NN tensor with a pure reshape (no pad /
    # no output slice HBM round-trips).
    lanes = next((l for l in _LANES_CHOICES if total % l == 0), None)
    if lanes is not None:
        x2d = flat.reshape(total // lanes, lanes)
        out = _mc_dropout_2d(x2d, seed_arr, threshold31, scale)
        return out.reshape(orig_shape)

    # Ragged fallback (total % 128 != 0, rare): kernel on the lane-aligned
    # bulk, plain jnp on the <512-element tail (same hash, same semantics).
    lanes = _LANES_CHOICES[0]
    bulk = (total // lanes) * lanes
    if bulk == 0:
        out = _dropout_flat_jnp(flat, 0, seed_arr, threshold31, scale)
        return out.reshape(orig_shape)
    head = _mc_dropout_2d(flat[:bulk].reshape(bulk // lanes, lanes),
                          seed_arr, threshold31, scale)
    tail = _dropout_flat_jnp(flat[bulk:], bulk, seed_arr, threshold31, scale)
    return jnp.concatenate([head.reshape(-1), tail]).reshape(orig_shape)


if __name__ == "__main__":
    key = jax.random.PRNGKey(0)
    x = jax.random.normal(key, (2, 4, 16, 16), dtype=jnp.float32)  # NCHW, 2048 elems

    p = 0.5
    y = jax.block_until_ready(mc_dropout(x, p=p, seed=1234))

    # Shape/dtype preserved; surviving elements scaled by 1/(1-p).
    assert y.shape == x.shape and y.dtype == x.dtype
    kept = y != 0.0
    assert bool(jnp.all(jnp.where(kept, jnp.isclose(y, x / (1.0 - p)), True)))
    drop_frac = 1.0 - float(jnp.mean(kept.astype(jnp.float32)))
    assert 0.35 < drop_frac < 0.65, f"unexpected drop fraction {drop_frac}"

    # Mask should not be a structured checkerboard: adjacent keep bits should
    # agree roughly half the time at p=0.5.
    kflat = kept.reshape(-1).astype(jnp.float32)
    same_adj = float(jnp.mean((kflat[1:] == kflat[:-1]).astype(jnp.float32)))
    assert 0.3 < same_adj < 0.7, f"structured mask: adjacent-equal frac {same_adj}"

    # Fresh mask per MC forward pass: different seeds give different masks.
    y2 = jax.block_until_ready(mc_dropout(x, p=p, seed=999))
    assert bool(jnp.any((y2 != 0.0) != kept))

    # p = 0 identity; p = 1 zeros (PyTorch semantics).
    assert bool(jnp.all(mc_dropout(x, p=0.0) == x))
    assert bool(jnp.all(mc_dropout(x, p=1.0, seed=3) == 0.0))

    # Size not a multiple of 512 but a multiple of 128 (lanes=128 path).
    xb = jax.random.normal(jax.random.PRNGKey(1), (5, 128), dtype=jnp.float32)
    yb = jax.block_until_ready(mc_dropout(xb, p=0.3, seed=7))
    kb = yb != 0.0
    assert bool(jnp.all(jnp.where(kb, jnp.isclose(yb, xb / 0.7), True)))

    # Ragged sizes: bulk + tail (700 elems) and pure-jnp tiny (105 elems).
    xc = jax.random.normal(jax.random.PRNGKey(2), (7, 100), dtype=jnp.float32)
    yc = jax.block_until_ready(mc_dropout(xc, p=0.5, seed=11))
    kc = yc != 0.0
    assert yc.shape == xc.shape
    assert bool(jnp.all(jnp.where(kc, jnp.isclose(yc, xc / 0.5), True)))
    xd = jax.random.normal(jax.random.PRNGKey(3), (3, 7, 5), dtype=jnp.float32)
    yd = jax.block_until_ready(mc_dropout(xd, p=0.5, seed=13))
    assert yd.shape == xd.shape and yd.dtype == xd.dtype

    # bf16 path (f32 scale math, dtype preserved).
    xh = x.astype(jnp.bfloat16)
    yh = jax.block_until_ready(mc_dropout(xh, p=p, seed=42))
    assert yh.shape == xh.shape and yh.dtype == jnp.bfloat16

    print("KERNEL_OK")
</pallas_src>

<mosaic_0001>
module attributes {stable_mosaic.version = 11 : i64} {
  func.func @_mc_dropout_kernel(%arg0: i32, %arg1: memref<1xi32, #tpu.memory_space<smem>>, %arg2: memref<4x512xf32, #tpu.memory_space<vmem>>, %arg3: memref<4x512xf32, #tpu.memory_space<vmem>>) attributes {dimension_semantics = [#tpu.dimension_semantics<parallel>], iteration_bounds = array<i64: 1>, scalar_prefetch = 0 : i64, scratch_operands = 0 : i64, tpu.core_type = #tpu.core_type<tc>, window_params = [{transform_indices = @transform_0, window_bounds = array<i64: 1>}, {transform_indices = @transform_1, window_bounds = array<i64: 4, 512>}, {transform_indices = @transform_2, window_bounds = array<i64: 4, 512>}]} {
    %c2048_i32 = arith.constant 2048 : i32
    %0 = arith.muli %arg0, %c2048_i32 : i32
    %c0 = arith.constant 0 : index
    %1 = memref.load %arg1[%c0] : memref<1xi32, #tpu.memory_space<smem>>
    %c-1640531527_i32 = arith.constant -1640531527 : i32
    %2 = arith.muli %1, %c-1640531527_i32 : i32
    %3 = arith.xori %0, %2 : i32
    %4 = tpu.iota {dimensions = array<i32: 0>} : vector<4x512xi32>
    %5 = tpu.iota {dimensions = array<i32: 1>} : vector<4x512xi32>
    %c9_i32 = arith.constant 9 : i32
    %6 = vector.broadcast %c9_i32 : i32 to vector<4x512xi32>
    %7 = arith.shli %4, %6 : vector<4x512xi32>
    %8 = arith.ori %7, %5 : vector<4x512xi32>
    %9 = vector.broadcast %3 : i32 to vector<4x512xi32>
    %10 = arith.xori %8, %9 : vector<4x512xi32>
    %c2146121005_i32 = arith.constant 2146121005 : i32
    %11 = vector.broadcast %c2146121005_i32 : i32 to vector<4x512xi32>
    %12 = arith.muli %10, %11 : vector<4x512xi32>
    %c15_i32 = arith.constant 15 : i32
    %13 = vector.broadcast %c15_i32 : i32 to vector<4x512xi32>
    %14 = arith.shrui %12, %13 : vector<4x512xi32>
    %15 = arith.xori %12, %14 : vector<4x512xi32>
    %c-2073254261_i32 = arith.constant -2073254261 : i32
    %16 = vector.broadcast %c-2073254261_i32 : i32 to vector<4x512xi32>
    %17 = arith.muli %15, %16 : vector<4x512xi32>
    %c1_i32 = arith.constant 1 : i32
    %18 = vector.broadcast %c1_i32 : i32 to vector<4x512xi32>
    %19 = arith.shrui %17, %18 : vector<4x512xi32>
    %c1073741824_i32 = arith.constant 1073741824 : i32
    %20 = vector.broadcast %c1073741824_i32 : i32 to vector<4x512xi32>
    %21 = arith.cmpi slt, %19, %20 : vector<4x512xi32>
    %c0_0 = arith.constant 0 : index
    %c0_1 = arith.constant 0 : index
    %22 = vector.load %arg2[%c0_0, %c0_1] : memref<4x512xf32, #tpu.memory_space<vmem>>, vector<4x512xf32>
    %cst = arith.constant 2.000000e+00 : f32
    %23 = vector.broadcast %cst : f32 to vector<4x512xf32>
    %24 = arith.mulf %22, %23 : vector<4x512xf32>
    %cst_2 = arith.constant 0.000000e+00 : f32
    %25 = vector.broadcast %cst_2 : f32 to vector<4x512xf32>
    %26 = arith.select %21, %24, %25 : vector<4x512xi1>, vector<4x512xf32>
    %c0_3 = arith.constant 0 : index
    %c0_4 = arith.constant 0 : index
    %27 = vector.load %arg3[%c0_3, %c0_4] : memref<4x512xf32, #tpu.memory_space<vmem>>, vector<4x512xf32>
    tpu.vector_store %arg3[%c0_3, %c0_4], %26 {strides = array<i32>} : memref<4x512xf32, #tpu.memory_space<vmem>>, vector<4x512xf32>,
    return
  }
  func.func @transform_0(%arg0: i32) -> i32 {
    %c0_i32 = arith.constant 0 : i32
    %c0_i32_0 = arith.constant 0 : i32
    return %c0_i32 : i32
  }
  func.func @transform_1(%arg0: i32) -> (i32, i32) {
    %c0_i32 = arith.constant 0 : i32
    %c0_i32_0 = arith.constant 0 : i32
    return %arg0, %c0_i32 : i32, i32
  }
  func.func @transform_2(%arg0: i32) -> (i32, i32) {
    %c0_i32 = arith.constant 0 : i32
    %c0_i32_0 = arith.constant 0 : i32
    return %arg0, %c0_i32 : i32, i32
  }
}

</mosaic_0001>

<llo_original>
// kernel: tpu_custom_call.1
$region0: #{tpu_custom_call.1}
  #allocation0 [shape = 'u32[]', space=smem, size = 0x4, offset = 0x4, fixed_abs, tag = 'smem constant byte address 0x4 - core index']
  #allocation1 [shape = 'u32[144,128]{1,0:T(1,128)}', space=vmem, size = 0x12000, scoped, tag = 'internal scratch']
  #allocation2 [shape = 's32[1]{0:T(128)S(6)}', space=smem, size = 0x200, scoped, tag = 'scoped memory for tpu_custom_call.1']
  %s0 = inlined_call_operand.<no memory space> [shape: s32[1], index: 0, kind: input, shape index: {}]
  %s1 = inlined_call_operand.hbm [shape: f32[4,512], index: 1, kind: input, shape index: {}, may-alias: {1,2}]
  %s2 = inlined_call_operand.hbm [shape: f32[4,512], index: 2, kind: output, shape index: {}, may-alias: {1,2}]
  %s3 = sld [smem:[#allocation0]]
  $region22: #{tpu_custom_call.1} parent=0
    _
  %s5 = ssub.s32 1, %s3
  %s6 = scalar_select 0, %s5, %s3
  %7 = sst [smem:[#allocation2]] %s0
  $region1: #{tpu_custom_call.1} parent=0
    #allocation3 [shape = 'u8[8192]{0}', space=vmem, size = 0x2000, scoped, tag = 'input window, operand 1, single buffered']
    #allocation4 [shape = 's32[1]{0}', space=sflag, size = 0x4, scoped, tag = 'scoped memory for tpu_custom_call.1']
    #allocation5 [shape = 's32[1]{0}', space=sflag, size = 0x4, scoped, tag = 'scoped memory for tpu_custom_call.1']
    #allocation6 [shape = 'u8[8192]{0}', space=vmem, size = 0x2000, scoped, tag = 'output window, operand 0, single buffered']
    %8 = vsyncpa [#allocation4], 0
    %9 = vsyncpa [#allocation5], 0
    // Predicated region
    $region2: #{tpu_custom_call.1} parent=1 // pred_check
      _
    $region3: #{tpu_custom_call.1} parent=1 // pred_check_branch
      %11 = sbr.rel (0) target = $region5
    $region4: #{tpu_custom_call.1} parent=1 // pred_region
      _
    $region5: #{tpu_custom_call.1} parent=1 // pred_fallthru
      _
    // Predicated region
    $region6: #{tpu_custom_call.1} parent=1 // pred_check
      _
    $region7: #{tpu_custom_call.1} parent=1 // pred_check_branch
      %13 = sbr.rel (0) target = $region9
    $region8: #{tpu_custom_call.1} parent=1 // pred_region
      %s15 = ssub.s32 256, 256
      %16 = vsyncadd [#allocation4], %s15
      %s18 = sshll.u32 [#allocation3], 4
      %s19 = int_to_ptr.vmem [resolvable:$true] %s18
      %21 = dma.hbm_to_vmem [thread:$0]  %s1, 256, %s19, [#allocation4]
    $region9: #{tpu_custom_call.1} parent=1 // pred_fallthru
      _
    // Predicated region
    $region10: #{tpu_custom_call.1} parent=1 // pred_check
      _
    $region11: #{tpu_custom_call.1} parent=1 // pred_check_branch
      %23 = sbr.rel (0) target = $region13
    $region12: #{tpu_custom_call.1} parent=1 // pred_region
      %24 = dma.done [#allocation4], 256
    $region13: #{tpu_custom_call.1} parent=1 // pred_fallthru
      _
    %s25 = smul.u32 0, 2048
    %s26 = sld [smem:[#allocation2]]
    %s27 = smul.u32 %s26, 2654435769
    %s28 = sxor.u32 %s25, %s27
    %v29 = vlaneseq
    %v30 = vshrl.u32 %v29, 7
    %v31 = vlaneseq
    %v32 = vand.u32 %v31, 127
    %v33 = vadd.s32 %v32, 128
    %v34 = vadd.s32 %v32, 256
    %v35 = vadd.s32 %v32, 384
    %v36 = vshll.u32 %v30, 9
    %v37 = vor.u32 %v36, %v32
    %v38 = vor.u32 %v36, %v33
    %v39 = vor.u32 %v36, %v34
    %v40 = vor.u32 %v36, %v35
    %v41 = vstv %s28
    %v42 = vxor.u32 %v37, %v41
    %v43 = vxor.u32 %v38, %v41
    %v44 = vxor.u32 %v39, %v41
    %v45 = vxor.u32 %v40, %v41
    %v46 = vmul.u32 %v42, 2146121005
    %v47 = vmul.u32 %v43, 2146121005
    %v48 = vmul.u32 %v44, 2146121005
    %v49 = vmul.u32 %v45, 2146121005
    %v50 = vshrl.u32 %v46, 15
    %v51 = vshrl.u32 %v47, 15
    %v52 = vshrl.u32 %v48, 15
    %v53 = vshrl.u32 %v49, 15
    %v54 = vxor.u32 %v46, %v50
    %v55 = vxor.u32 %v47, %v51
    %v56 = vxor.u32 %v48, %v52
    %v57 = vxor.u32 %v49, %v53
    %v58 = vmul.u32 %v54, 2221713035
    %v59 = vmul.u32 %v55, 2221713035
    %v60 = vmul.u32 %v56, 2221713035
    %v61 = vmul.u32 %v57, 2221713035
    %v62 = vshrl.u32 %v58, 1
    %v63 = vshrl.u32 %v59, 1
    %v64 = vshrl.u32 %v60, 1
    %v65 = vshrl.u32 %v61, 1
    %vm66 = vcmp.lt.s32.totalorder %v62, 1073741824
    %vm67 = vcmp.lt.s32.totalorder %v63, 1073741824
    %vm68 = vcmp.lt.s32.totalorder %v64, 1073741824
    %vm69 = vcmp.lt.s32.totalorder %v65, 1073741824
    %v70 = vld [vmem:[#allocation3] sm:$0xff]
    %v71 = vld [vmem:[#allocation3 + $0x8] sm:$0xff]
    %v72 = vmul.f32 %v70, 2.0
    %v73 = vmul.f32 %v71, 2.0
    %v76 = vcombine.high %v72, %v72
    %v77 = vcombine.high %v73, %v73
    %v80 = vsel %vm66, %v72, 0.0
    %v81 = vsel %vm67, %v76, 0.0
    %v82 = vsel %vm68, %v73, 0.0
    %v83 = vsel %vm69, %v77, 0.0
    %v88 = vcombine.low %v80, %v81
    %v89 = vcombine.low %v82, %v83
    %92 = vst [vmem:[#allocation6] sm:$0xff] %v88
    %93 = vst [vmem:[#allocation6 + $0x8] sm:$0xff] %v89
    // Predicated region
    $region14: #{tpu_custom_call.1} parent=1 // pred_check
      _
    $region15: #{tpu_custom_call.1} parent=1 // pred_check_branch
      %95 = sbr.rel (0) target = $region17
    $region16: #{tpu_custom_call.1} parent=1 // pred_region
      %s97 = ssub.s32 256, 256
      %98 = vsyncadd [#allocation5], %s97
      %s100 = sshll.u32 [#allocation6], 4
      %s101 = int_to_ptr.vmem [resolvable:$true] %s100
      %103 = dma.vmem_to_hbm [thread:$0]  %s101, 256, %s2, [#allocation5]
    $region17: #{tpu_custom_call.1} parent=1 // pred_fallthru
      _
    // Predicated region
    $region18: #{tpu_custom_call.1} parent=1 // pred_check
      _
    $region19: #{tpu_custom_call.1} parent=1 // pred_check_branch
      %105 = sbr.rel (0) target = $region21
    $region20: #{tpu_custom_call.1} parent=1 // pred_region
      %106 = dma.done [#allocation5], 256
    $region21: #{tpu_custom_call.1} parent=1 // pred_fallthru
      _
    %107 = vsyncpa [#allocation4], 1
    %108 = vsyncpa [#allocation5], 1

</llo_original>
